<compile_context>
chip_gen: v7x
topology: tpu7x:2x2x1
jax: 0.10.0
libtpu: 0.0.40
codegen_flags: <defaults>
</compile_context>

<pallas_src>
import functools

import jax
import jax.numpy as jnp
from jax.experimental import pallas as pl
from jax.experimental.pallas import tpu as pltpu


_VMEM_LIMIT = 64 * 1024 * 1024  # conservative cap


def _cp(dims):
    return pltpu.CompilerParams(dimension_semantics=dims,
                                vmem_limit_bytes=_VMEM_LIMIT)


def _round_up(x, m):
    return ((x + m - 1) // m) * m


# ----------------------------------------------------------------------------
# Tiled GEMM (+bias, +activation) with VMEM f32 accumulator (final 1x1 conv).
# ----------------------------------------------------------------------------
def _gemm_kernel(a_ref, b_ref, bias_ref, o_ref, acc_ref, *, activation):
    k = pl.program_id(2)

    @pl.when(k == 0)
    def _():
        acc_ref[...] = jnp.zeros_like(acc_ref)

    acc_ref[...] += jnp.dot(a_ref[...], b_ref[...],
                            preferred_element_type=jnp.float32)

    @pl.when(k == pl.num_programs(2) - 1)
    def _():
        res = acc_ref[...] + bias_ref[...]
        if activation == "sigmoid":
            res = jax.nn.sigmoid(res)
        elif activation == "relu":
            res = jnp.maximum(res, 0.0)
        o_ref[...] = res


def pallas_matmul(a, b, bias=None, activation=None):
    """act(a @ b + bias).  a: (M, K), b: (K, N).  Returns f32 (M, N)."""
    m, k = a.shape
    _, n = b.shape
    np_ = _round_up(n, 128)              # lane-dense output stores
    kp = _round_up(k, 8)
    tk = kp if kp <= 512 else 512
    kp = _round_up(kp, tk)
    tn = 128
    tm = min(256, _round_up(m, 8))
    mp = _round_up(m, tm)

    a_p = jnp.pad(a.astype(jnp.bfloat16), ((0, mp - m), (0, kp - k)))
    b_p = jnp.pad(b.astype(jnp.bfloat16), ((0, kp - k), (0, np_ - n)))
    if bias is None:
        bias = jnp.zeros((n,), jnp.float32)
    bias_p = jnp.pad(bias.astype(jnp.float32).reshape(1, n),
                     ((0, 0), (0, np_ - n)))

    out = pl.pallas_call(
        functools.partial(_gemm_kernel, activation=activation),
        out_shape=jax.ShapeDtypeStruct((mp, np_), jnp.float32),
        grid=(mp // tm, np_ // tn, kp // tk),
        in_specs=[
            pl.BlockSpec((tm, tk), lambda i, j, kk: (i, kk)),
            pl.BlockSpec((tk, tn), lambda i, j, kk: (kk, j)),
            pl.BlockSpec((1, tn), lambda i, j, kk: (0, j)),
        ],
        out_specs=pl.BlockSpec((tm, tn), lambda i, j, kk: (i, j)),
        scratch_shapes=[pltpu.VMEM((tm, tn), jnp.float32)],
        compiler_params=_cp(("parallel", "parallel", "arbitrary")),
    )(a_p, b_p, bias_p)
    return out[:m, :n]


# ----------------------------------------------------------------------------
# 3x3x3 conv, stride 1, pad 1, bias-free, optional fused ReLU.
# One grid step per (n, d); 27 tap matmuls of (H*W_pad, Cin) x (Cin, Cout) each,
# accumulated in f32 registers; single lane-contiguous store at the end.
# ----------------------------------------------------------------------------
def _conv_tap_kernel(x0_ref, x1_ref, x2_ref, w_ref, o_ref, *,
                     H, Wo, Cin, Cout, apply_relu):
    # x*_ref: (1, 1, Hp, Wpp, Cin) bf16 -- padded planes at depth d, d+1, d+2
    # w_ref : (3, 3, 3, Cin, Cout) bf16
    # o_ref : (1, 1, H, Wo, Cout) f32
    taps = (x0_ref, x1_ref, x2_ref)
    acc = jnp.zeros((H * Wo, Cout), jnp.float32)
    for a in range(3):
        for b in range(3):
            for c in range(3):
                win = taps[a][0, 0, pl.ds(b, H), pl.ds(c, Wo), :]   # (H, Wo, Cin)
                win = win.reshape(H * Wo, Cin)                      # Wo % 8 == 0 -> free
                acc = acc + jnp.dot(win, w_ref[a, b, c],
                                    preferred_element_type=jnp.float32)
    if apply_relu:
        acc = jnp.maximum(acc, 0.0)
    o_ref[0, 0] = acc.reshape(H, Wo, Cout)


def conv3d_3x3(x, w, apply_relu):
    """x: (N, D, H, W, Cin) f32; w: PyTorch layout (Cout, Cin, 3, 3, 3); pad=1, stride=1."""
    n, d, h, wd, cin = x.shape
    cout = w.shape[0]
    assert tuple(w.shape[2:]) == (3, 3, 3)
    wo = _round_up(wd, 8)                # sublane-aligned output width
    hp, wpp = h + 2, wo + 2
    # One padded bf16 copy (~1.2x of the input) instead of a materialized im2col matrix.
    xp = jnp.pad(x.astype(jnp.bfloat16),
                 ((0, 0), (1, 1), (1, 1), (1, 1 + (wo - wd)), (0, 0)))
    w_r = jnp.transpose(w, (2, 3, 4, 1, 0)).astype(jnp.bfloat16)   # (kd,kh,kw,Cin,Cout)

    def tap_spec(off):
        return pl.BlockSpec((1, 1, hp, wpp, cin),
                            lambda ni, di, o=off: (ni, di + o, 0, 0, 0))

    kernel = functools.partial(_conv_tap_kernel, H=h, Wo=wo, Cin=cin, Cout=cout,
                               apply_relu=apply_relu)
    # TODO(synk): for large H*W, tile H through an extra grid axis; a rolling 3-plane
    #             VMEM window would also cut the 3x re-read of each depth plane to 1x.
    out = pl.pallas_call(
        kernel,
        out_shape=jax.ShapeDtypeStruct((n, d, h, wo, cout), jnp.float32),
        grid=(n, d),
        in_specs=[tap_spec(0), tap_spec(1), tap_spec(2),
                  pl.BlockSpec((3, 3, 3, cin, cout),
                               lambda ni, di: (0, 0, 0, 0, 0))],
        out_specs=pl.BlockSpec((1, 1, h, wo, cout),
                               lambda ni, di: (ni, di, 0, 0, 0)),
        compiler_params=_cp(("parallel", "parallel")),
    )(xp, xp, xp, w_r)
    if wo != wd:
        out = out[:, :, :, :wd, :]
    return out


# ----------------------------------------------------------------------------
# GroupNorm: tiled one-pass stats + tiled scale/shift apply.
# ----------------------------------------------------------------------------
def _gn_stats_kernel(x_ref, sum_ref, sq_ref):
    @pl.when(pl.program_id(1) == 0)
    def _():
        sum_ref[...] = jnp.zeros_like(sum_ref)
        sq_ref[...] = jnp.zeros_like(sq_ref)

    x = x_ref[0]                                           # (ts, C) f32
    sum_ref[0] += jnp.sum(x, axis=0, keepdims=True)        # (1, C)
    sq_ref[0] += jnp.sum(x * x, axis=0, keepdims=True)     # (1, C)


def _gn_apply_kernel(x_ref, scale_ref, shift_ref, o_ref):
    o_ref[0] = x_ref[0] * scale_ref[0] + shift_ref[0]


def _pick_spatial_tile(s):
    for t in (2048, 1024, 512, 256, 128, 64, 32, 16, 8):
        if s % t == 0:
            return t
    return s


def groupnorm(x, gamma, beta, num_groups, eps=1e-5):
    """PyTorch nn.GroupNorm semantics on (N, D, H, W, C)."""
    n, d, h, w, c = x.shape
    s = d * h * w
    cg = c // num_groups
    ts = _pick_spatial_tile(s)
    xf = x.reshape(n, s, c)
    grid = (n, s // ts)

    sums, sqs = pl.pallas_call(
        _gn_stats_kernel,
        out_shape=(jax.ShapeDtypeStruct((n, 1, c), jnp.float32),
                   jax.ShapeDtypeStruct((n, 1, c), jnp.float32)),
        grid=grid,
        in_specs=[pl.BlockSpec((1, ts, c), lambda i, j: (i, j, 0))],
        out_specs=(pl.BlockSpec((1, 1, c), lambda i, j: (i, 0, 0)),
                   pl.BlockSpec((1, 1, c), lambda i, j: (i, 0, 0))),
        compiler_params=_cp(("parallel", "arbitrary")),
    )(xf)

    # Tiny (N, C)-sized per-group combine in plain JAX.
    cnt = float(s * cg)
    g_sum = sums[:, 0, :].reshape(n, num_groups, cg).sum(-1)
    g_sq = sqs[:, 0, :].reshape(n, num_groups, cg).sum(-1)
    mean = g_sum / cnt
    var = jnp.maximum(g_sq / cnt - mean * mean, 0.0)
    inv = jax.lax.rsqrt(var + eps)
    mean_c = jnp.repeat(mean, cg, axis=1)                       # (N, C)
    inv_c = jnp.repeat(inv, cg, axis=1)                         # (N, C)
    scale_c = (inv_c * gamma[None, :]).reshape(n, 1, c)
    shift_c = (beta[None, :] - mean_c * inv_c * gamma[None, :]).reshape(n, 1, c)

    y = pl.pallas_call(
        _gn_apply_kernel,
        out_shape=jax.ShapeDtypeStruct((n, s, c), jnp.float32),
        grid=grid,
        in_specs=[pl.BlockSpec((1, ts, c), lambda i, j: (i, j, 0)),
                  pl.BlockSpec((1, 1, c), lambda i, j: (i, 0, 0)),
                  pl.BlockSpec((1, 1, c), lambda i, j: (i, 0, 0))],
        out_specs=pl.BlockSpec((1, ts, c), lambda i, j: (i, j, 0)),
        compiler_params=_cp(("parallel", "parallel")),
    )(xf, scale_c, shift_c)
    return y.reshape(n, d, h, w, c)


# ----------------------------------------------------------------------------
# MaxPool3d(kernel_size=2, stride=2), tiled over depth-pairs, no HBM transpose.
# ----------------------------------------------------------------------------
def _maxpool_kernel(x_ref, o_ref):
    x = x_ref[...]                       # (2, ho, 2, wo, 2, c)
    m = jnp.max(x, axis=4)               # W-pairs -> (2, ho, 2, wo, c)
    m = jnp.maximum(m[0], m[1])          # D-pair  -> (ho, 2, wo, c)
    m = jnp.maximum(m[:, 0], m[:, 1])    # H-pair  -> (ho, wo, c)
    o_ref[0] = m


def maxpool3d_2x(x):
    """MaxPool3d(kernel_size=2, stride=2) on (N, D, H, W, C)."""
    n, d, h, w, c = x.shape
    assert d % 2 == 0 and h % 2 == 0 and w % 2 == 0
    do, ho, wo = d // 2, h // 2, w // 2
    xr = x.reshape(n * d, ho, 2, wo, 2, c)       # contiguity-preserving reshape (free)
    out = pl.pallas_call(
        _maxpool_kernel,
        out_shape=jax.ShapeDtypeStruct((n * do, ho, wo, c), jnp.float32),
        grid=(n * do,),
        in_specs=[pl.BlockSpec((2, ho, 2, wo, 2, c),
                               lambda i: (i, 0, 0, 0, 0, 0))],
        out_specs=pl.BlockSpec((1, ho, wo, c), lambda i: (i, 0, 0, 0)),
        compiler_params=_cp(("parallel",)),
    )(xr)
    return out.reshape(n, do, ho, wo, c)


# ----------------------------------------------------------------------------
# Nearest-neighbour upsample (exact-2x path is a pure broadcast, no gathers).
# ----------------------------------------------------------------------------
def upsample_nearest(x, target_spatial):
    n, d, h, w, c = x.shape
    dt, ht, wt = target_spatial
    if (dt, ht, wt) == (2 * d, 2 * h, 2 * w):
        y = jnp.broadcast_to(x[:, :, None, :, None, :, None, :],
                             (n, d, 2, h, 2, w, 2, c))
        return y.reshape(n, dt, ht, wt, c)
    di = (jnp.arange(dt) * d) // dt
    hi = (jnp.arange(ht) * h) // ht
    wi = (jnp.arange(wt) * w) // wt
    return jnp.take(jnp.take(jnp.take(x, di, axis=1), hi, axis=2), wi, axis=3)


# ----------------------------------------------------------------------------
# Model (layer_order = 'gcr': GroupNorm -> Conv3d(bias=False) -> ReLU)
# ----------------------------------------------------------------------------
def single_conv(x, p):
    x = groupnorm(x, p["gn_w"], p["gn_b"], p["gn_groups"])
    return conv3d_3x3(x, p["conv_w"], apply_relu=True)


def double_conv(x, dc):
    return single_conv(single_conv(x, dc["sc1"]), dc["sc2"])


def unet3d_forward(x_ncdhw, params):
    x = jnp.transpose(x_ncdhw, (0, 2, 3, 4, 1)).astype(jnp.float32)   # NCDHW -> NDHWC
    enc_feats = []
    for enc in params["encoders"]:
        if enc["pool"]:
            x = maxpool3d_2x(x)
        x = double_conv(x, enc["dc"])
        enc_feats.insert(0, x)
    enc_feats = enc_feats[1:]
    for dec, feat in zip(params["decoders"], enc_feats):
        xu = upsample_nearest(x, feat.shape[1:4])
        # TODO(synk): fold this channel-concat into the decoder conv by splitting its
        #             K dimension into (skip, upsampled) halves to avoid materializing it.
        x = jnp.concatenate([feat, xu], axis=-1)       # torch.cat((enc, x), dim=1)
        x = double_conv(x, dec["dc"])

    # Final 1x1x1 conv (+bias) + sigmoid as a tiled, N-padded GEMM.
    n, d, h, w, c = x.shape
    fw, fb = params["final"]["w"], params["final"]["b"]
    cout = fw.shape[0]
    scores = pallas_matmul(x.reshape(n * d * h * w, c),
                           fw.reshape(cout, c).T, bias=fb, activation="sigmoid")
    scores = scores.reshape(n, d, h, w, cout)
    return (jnp.transpose(x, (0, 4, 1, 2, 3)),          # features (NCDHW)
            jnp.transpose(scores, (0, 4, 1, 2, 3)))     # sigmoid(final_conv(x))


def build_unet_params(key, in_channels, out_channels, f_maps, num_groups):
    keys = iter(jax.random.split(key, 128))

    def make_single(cin, cout, k=3):
        g = num_groups if cin >= num_groups else 1
        assert cin % g == 0
        return {
            "gn_w": jnp.ones((cin,), jnp.float32),
            "gn_b": jnp.zeros((cin,), jnp.float32),
            "gn_groups": g,
            "conv_w": jax.random.normal(next(keys), (cout, cin, k, k, k),
                                        jnp.float32) * 0.1,
        }

    def make_double(cin, cout, encoder):
        if encoder:
            c1o = cout // 2
            if c1o < cin:
                c1o = cin
            c1i, c2i, c2o = cin, c1o, cout
        else:
            c1i, c1o, c2i, c2o = cin, cout, cout, cout
        return {"sc1": make_single(c1i, c1o), "sc2": make_single(c2i, c2o)}

    encoders = []
    for i, cf in enumerate(f_maps):
        cin = in_channels if i == 0 else f_maps[i - 1]
        encoders.append({"pool": i > 0, "dc": make_double(cin, cf, encoder=True)})

    decoders = []
    rev = list(reversed(f_maps))
    for i in range(len(rev) - 1):
        decoders.append({"dc": make_double(rev[i] + rev[i + 1], rev[i + 1],
                                           encoder=False)})

    final = {
        "w": jax.random.normal(next(keys), (out_channels, f_maps[0], 1, 1, 1),
                               jnp.float32) * 0.1,
        "b": jax.random.normal(next(keys), (out_channels,), jnp.float32) * 0.1,
    }
    return {"encoders": encoders, "decoders": decoders, "final": final}


# ----------------------------------------------------------------------------
if __name__ == "__main__":
    key = jax.random.PRNGKey(0)
    k_x, k_p = jax.random.split(key)

    in_channels, out_channels = 2, 2
    f_maps = [4, 8]          # f_maps=4, num_levels=2
    num_groups = 2
    batch, spatial = 2, 8

    x = jax.random.normal(k_x, (batch, in_channels, spatial, spatial, spatial),
                          jnp.float32)
    params = build_unet_params(k_p, in_channels, out_channels, f_maps, num_groups)

    feats, scores = unet3d_forward(x, params)
    feats = jax.block_until_ready(feats)
    scores = jax.block_until_ready(scores)

    assert feats.shape == (batch, f_maps[0], spatial, spatial, spatial)
    assert scores.shape == (batch, out_channels, spatial, spatial, spatial)
    assert bool(jnp.all(jnp.isfinite(feats))) and bool(jnp.all(jnp.isfinite(scores)))
    assert bool(jnp.all((scores >= 0.0) & (scores <= 1.0)))
    print("KERNEL_OK")
</pallas_src>

<mosaic_0001>
module attributes {stable_mosaic.version = 11 : i64} {
  func.func @_gn_stats_kernel(%arg0: i32, %arg1: i32, %arg2: memref<1x512x2xf32, #tpu.memory_space<vmem>>, %arg3: memref<1x1x2xf32, #tpu.memory_space<vmem>>, %arg4: memref<1x1x2xf32, #tpu.memory_space<vmem>>) attributes {dimension_semantics = [#tpu.dimension_semantics<parallel>, #tpu.dimension_semantics<arbitrary>], iteration_bounds = array<i64: 2, 1>, scalar_prefetch = 0 : i64, scratch_operands = 0 : i64, tpu.core_type = #tpu.core_type<tc>, window_params = [{transform_indices = @transform_0, window_bounds = array<i64: 1, 512, 2>}, {transform_indices = @transform_1, window_bounds = array<i64: 1, 1, 2>}, {transform_indices = @transform_2, window_bounds = array<i64: 1, 1, 2>}]} {
    %c0_i32 = arith.constant 0 : i32
    %0 = arith.cmpi eq, %arg1, %c0_i32 : i32
    %1 = arith.extui %0 : i1 to i32
    %c0_i32_0 = arith.constant 0 : i32
    %2 = arith.cmpi ne, %1, %c0_i32_0 : i32
    scf.if %2 {
      %cst_16 = arith.constant 0.000000e+00 : f32
      %22 = vector.broadcast %cst_16 : f32 to vector<1x1x2xf32>
      %c0_17 = arith.constant 0 : index
      %c0_18 = arith.constant 0 : index
      %c0_19 = arith.constant 0 : index
      %23 = vector.load %arg3[%c0_17, %c0_18, %c0_19] : memref<1x1x2xf32, #tpu.memory_space<vmem>>, vector<1x1x2xf32>
      tpu.vector_store %arg3[%c0_17, %c0_18, %c0_19], %22 {strides = array<i32>} : memref<1x1x2xf32, #tpu.memory_space<vmem>>, vector<1x1x2xf32>,
      %cst_20 = arith.constant 0.000000e+00 : f32
      %24 = vector.broadcast %cst_20 : f32 to vector<1x1x2xf32>
      %c0_21 = arith.constant 0 : index
      %c0_22 = arith.constant 0 : index
      %c0_23 = arith.constant 0 : index
      %25 = vector.load %arg4[%c0_21, %c0_22, %c0_23] : memref<1x1x2xf32, #tpu.memory_space<vmem>>, vector<1x1x2xf32>
      tpu.vector_store %arg4[%c0_21, %c0_22, %c0_23], %24 {strides = array<i32>} : memref<1x1x2xf32, #tpu.memory_space<vmem>>, vector<1x1x2xf32>,
    } else {
    }
    %c0 = arith.constant 0 : index
    %c0_1 = arith.constant 0 : index
    %c0_2 = arith.constant 0 : index
    %3 = vector.load %arg2[%c0, %c0_1, %c0_2] : memref<1x512x2xf32, #tpu.memory_space<vmem>>, vector<1x512x2xf32>
    %4 = vector.shape_cast %3 : vector<1x512x2xf32> to vector<512x2xf32>
    %c0_3 = arith.constant 0 : index
    %c0_4 = arith.constant 0 : index
    %c0_5 = arith.constant 0 : index
    %5 = vector.load %arg3[%c0_3, %c0_4, %c0_5] : memref<1x1x2xf32, #tpu.memory_space<vmem>>, vector<1x1x2xf32>
    %6 = vector.shape_cast %5 : vector<1x1x2xf32> to vector<1x2xf32>
    %cst = arith.constant dense<0.000000e+00> : vector<2xf32>
    %7 = vector.multi_reduction <add>, %4, %cst [0] : vector<512x2xf32> to vector<2xf32>
    %8 = vector.shape_cast %7 : vector<2xf32> to vector<1x2xf32>
    %9 = arith.addf %6, %8 : vector<1x2xf32>
    %c0_6 = arith.constant 0 : index
    %c0_7 = arith.constant 0 : index
    %c0_8 = arith.constant 0 : index
    %10 = vector.load %arg3[%c0_6, %c0_7, %c0_8] : memref<1x1x2xf32, #tpu.memory_space<vmem>>, vector<1x1x2xf32>
    %11 = vector.shape_cast %10 : vector<1x1x2xf32> to vector<1x2xf32>
    %12 = vector.shape_cast %9 : vector<1x2xf32> to vector<1x1x2xf32>
    tpu.vector_store %arg3[%c0_6, %c0_7, %c0_8], %12 {strides = array<i32>} : memref<1x1x2xf32, #tpu.memory_space<vmem>>, vector<1x1x2xf32>,
    %c0_9 = arith.constant 0 : index
    %c0_10 = arith.constant 0 : index
    %c0_11 = arith.constant 0 : index
    %13 = vector.load %arg4[%c0_9, %c0_10, %c0_11] : memref<1x1x2xf32, #tpu.memory_space<vmem>>, vector<1x1x2xf32>
    %14 = vector.shape_cast %13 : vector<1x1x2xf32> to vector<1x2xf32>
    %15 = arith.mulf %4, %4 : vector<512x2xf32>
    %cst_12 = arith.constant dense<0.000000e+00> : vector<2xf32>
    %16 = vector.multi_reduction <add>, %15, %cst_12 [0] : vector<512x2xf32> to vector<2xf32>
    %17 = vector.shape_cast %16 : vector<2xf32> to vector<1x2xf32>
    %18 = arith.addf %14, %17 : vector<1x2xf32>
    %c0_13 = arith.constant 0 : index
    %c0_14 = arith.constant 0 : index
    %c0_15 = arith.constant 0 : index
    %19 = vector.load %arg4[%c0_13, %c0_14, %c0_15] : memref<1x1x2xf32, #tpu.memory_space<vmem>>, vector<1x1x2xf32>
    %20 = vector.shape_cast %19 : vector<1x1x2xf32> to vector<1x2xf32>
    %21 = vector.shape_cast %18 : vector<1x2xf32> to vector<1x1x2xf32>
    tpu.vector_store %arg4[%c0_13, %c0_14, %c0_15], %21 {strides = array<i32>} : memref<1x1x2xf32, #tpu.memory_space<vmem>>, vector<1x1x2xf32>,
    return
  }
  func.func @transform_0(%arg0: i32, %arg1: i32) -> (i32, i32, i32) {
    %c0_i32 = arith.constant 0 : i32
    %c0_i32_0 = arith.constant 0 : i32
    return %arg0, %arg1, %c0_i32 : i32, i32, i32
  }
  func.func @transform_1(%arg0: i32, %arg1: i32) -> (i32, i32, i32) {
    %c0_i32 = arith.constant 0 : i32
    %c0_i32_0 = arith.constant 0 : i32
    %c0_i32_1 = arith.constant 0 : i32
    return %arg0, %c0_i32, %c0_i32_0 : i32, i32, i32
  }
  func.func @transform_2(%arg0: i32, %arg1: i32) -> (i32, i32, i32) {
    %c0_i32 = arith.constant 0 : i32
    %c0_i32_0 = arith.constant 0 : i32
    %c0_i32_1 = arith.constant 0 : i32
    return %arg0, %c0_i32, %c0_i32_0 : i32, i32, i32
  }
}

</mosaic_0001>

<llo_original>
// kernel: tpu_custom_call.1
$region0: #{tpu_custom_call.1}
  #allocation0 [shape = 'u32[]', space=smem, size = 0x4, offset = 0x4, fixed_abs, tag = 'smem constant byte address 0x4 - core index']
  #allocation1 [shape = 'u32[144,128]{1,0:T(1,128)}', space=vmem, size = 0x12000, scoped, tag = 'internal scratch']
  %s0 = inlined_call_operand.hbm [shape: f32[2,512,2], index: 0, kind: input, shape index: {}]
  %s1 = inlined_call_operand.hbm [shape: f32[2,1,2], index: 1, kind: output, shape index: {0}]
  %s2 = inlined_call_operand.hbm [shape: f32[2,1,2], index: 2, kind: output, shape index: {1}]
  %3 = xla_tuple %s1, %s2
  %s4 = sld [smem:[#allocation0]]
  $region53: #{tpu_custom_call.1} parent=0
    _
  %s6 = ssub.s32 1, %s4
  %s7 = scalar_select 0, %s6, %s4
  $region1: #{tpu_custom_call.1} parent=0
    #allocation2 [shape = 'u8[524288]{0}', space=vmem, size = 0x80000, scoped, tag = 'input window, operand 0']
    #allocation3 [shape = 's32[2]{0}', space=sflag, size = 0x8, scoped, tag = 'scoped memory for tpu_custom_call.1']
    #allocation4 [shape = 's32[2]{0}', space=sflag, size = 0x8, scoped, tag = 'scoped memory for tpu_custom_call.1']
    #allocation5 [shape = 'u8[1024]{0}', space=vmem, size = 0x400, scoped, tag = 'output window, operand 0']
    #allocation6 [shape = 'u8[1024]{0}', space=vmem, size = 0x400, scoped, tag = 'output window, operand 1']
    #allocation7 [shape = 's32[2]{0}', space=sflag, size = 0x8, scoped, tag = 'scoped memory for tpu_custom_call.1']
    %8 = vsyncpa [#allocation3], 0
    %s9 = scalar_lea.sflag [#allocation3], 1
    %10 = vsyncpa %s9, 0
    %11 = vsyncpa [#allocation4], 0
    %s12 = scalar_lea.sflag [#allocation4], 1
    %13 = vsyncpa %s12, 0
    %14 = vsyncpa [#allocation7], 0
    %s15 = scalar_lea.sflag [#allocation7], 1
    %16 = vsyncpa %s15, 0
    loop: start=0, step=1, limit=4
    $region2: #{tpu_custom_call.1} parent=1 // loop_pre_header
      _
    $region3: #{tpu_custom_call.1} parent=1 // loop_header
      %s18 = sphi 0, %s22
      %p19 = scmp.ge.s32.totalorder %s18, 4
      %s25 = sphi 0, %s37
      %s26 = sphi 0, %s33
      %s27 = sphi 0, %s25
      %s28 = sphi 0, %s26
      %s29 = sphi 0, %s27
      %s30 = sphi 0, %s28
      %s42 = sphi 0, %s44
      %s45 = sphi 0, %s42
      %s46 = sphi 0, %s45
      %s62 = sphi 0, %s46
      %s68 = sphi 0, %s70
      %s71 = sphi 0, %s68
      %s72 = sphi 0, %s71
      %s88 = sphi 0, %s72
      %s94 = sphi 0, %s96
      %s97 = sphi 0, %s94
      %s98 = sphi 0, %s97
      %s114 = sphi 0, %s98
    $region4: #{tpu_custom_call.1} parent=1 // loop_header_branch
      %21 = sbr.rel (%p19) target = $region8
    $region5: #{tpu_custom_call.1} parent=1 // loop_body
      %s23 = ssub.s32 %s18, 1
      %s24 = ssub.s32 %s18, 2
      %s31 = sadd.s32 1, %s26
      %p32 = scmp.ge.s32.totalorder %s31, 1
      %s33 = scalar_select %p32, 0, %s31
      %s34 = sadd.s32 1, %s25
      %s35 = scalar_select %p32, %s34, %s25
      %p36 = scmp.ge.s32.totalorder %s35, 2
      %s37 = scalar_select %p36, 0, %s35
      %s38 = ssub.s32 %s25, %s37
      %s39 = ssub.s32 %s26, %s33
      %s40 = sor.u32 %s38, %s39
      %p41 = scmp.eq.s32.totalorder %s40, 0
      %s43 = sadd.s32 %s42, 1
      %s44 = scalar_select %p41, %s42, %s43
      %p47 = pneg %p41
      %p48 = scmp.eq.s32.totalorder %s18, 1
      %p49 = por %p47, %p48
      %p50 = scmp.ne.s32.totalorder %s42, %s45
      %p51 = scmp.eq.s32.totalorder %s18, 0
      %p52 = por %p50, %p51
      %p53 = scmp.ne.s32.totalorder %s42, %s45
      %p54 = scmp.eq.s32.totalorder %s23, 1
      %p55 = por %p53, %p54
      %p56 = scmp.ne.s32.totalorder %s45, %s46
      %p57 = scmp.eq.s32.totalorder %s23, 0
      %p58 = por %p56, %p57
      %p59 = scmp.ne.s32.totalorder %s45, %s46
      %p60 = scmp.eq.s32.totalorder %s24, 1
      %p61 = por %p59, %p60
      %p63 = scmp.ne.s32.totalorder %s46, %s62
      %p64 = scmp.eq.s32.totalorder %s24, 0
      %p65 = por %p63, %p64
      %s66 = ssub.s32 %s25, %s37
      %p67 = scmp.eq.s32.totalorder %s66, 0
      %s69 = sadd.s32 %s68, 1
      %s70 = scalar_select %p67, %s68, %s69
      %p73 = pneg %p67
      %p74 = scmp.eq.s32.totalorder %s18, 1
      %p75 = por %p73, %p74
      %p76 = scmp.ne.s32.totalorder %s68, %s71
      %p77 = scmp.eq.s32.totalorder %s18, 0
      %p78 = por %p76, %p77
      %p79 = scmp.ne.s32.totalorder %s68, %s71
      %p80 = scmp.eq.s32.totalorder %s23, 1
      %p81 = por %p79, %p80
      %p82 = scmp.ne.s32.totalorder %s71, %s72
      %p83 = scmp.eq.s32.totalorder %s23, 0
      %p84 = por %p82, %p83
      %p85 = scmp.ne.s32.totalorder %s71, %s72
      %p86 = scmp.eq.s32.totalorder %s24, 1
      %p87 = por %p85, %p86
      %p89 = scmp.ne.s32.totalorder %s72, %s88
      %p90 = scmp.eq.s32.totalorder %s24, 0
      %p91 = por %p89, %p90
      %s92 = ssub.s32 %s25, %s37
      %p93 = scmp.eq.s32.totalorder %s92, 0
      %s95 = sadd.s32 %s94, 1
      %s96 = scalar_select %p93, %s94, %s95
      %p99 = pneg %p93
      %p100 = scmp.eq.s32.totalorder %s18, 1
      %p101 = por %p99, %p100
      %p102 = scmp.ne.s32.totalorder %s94, %s97
      %p103 = scmp.eq.s32.totalorder %s18, 0
      %p104 = por %p102, %p103
      %p105 = scmp.ne.s32.totalorder %s94, %s97
      %p106 = scmp.eq.s32.totalorder %s23, 1
      %p107 = por %p105, %p106
      %p108 = scmp.ne.s32.totalorder %s97, %s98
      %p109 = scmp.eq.s32.totalorder %s23, 0
      %p110 = por %p108, %p109
      %p111 = scmp.ne.s32.totalorder %s97, %s98
      %p112 = scmp.eq.s32.totalorder %s24, 1
      %p113 = por %p111, %p112
      %p115 = scmp.ne.s32.totalorder %s98, %s114
      %p116 = scmp.eq.s32.totalorder %s24, 0
      %p117 = por %p115, %p116
      %p118 = scmp.le.s32.totalorder 1, %s18
      %p119 = scmp.lt.s32.totalorder %s18, 3
      %p120 = pnand %p118, %p119
      %p121 = pneg %p120
      // Predicated region
      $region9: #{tpu_custom_call.1} parent=5 // pred_check
        _
      $region10: #{tpu_custom_call.1} parent=5 // pred_check_branch
        %123 = sbr.rel (%p120) target = $region12
      $region11: #{tpu_custom_call.1} parent=5 // pred_region
        %s124 = ssub.s32 %s18, 1
      $region12: #{tpu_custom_call.1} parent=5 // pred_fallthru
        _
      %p125 = scmp.lt.s32.totalorder %s18, 2
      // Predicated region
      $region13: #{tpu_custom_call.1} parent=5 // pred_check
        %p126 = pneg %p125
      $region14: #{tpu_custom_call.1} parent=5 // pred_check_branch
        %128 = sbr.rel (%p126) target = $region16
      $region15: #{tpu_custom_call.1} parent=5 // pred_region
        // Predicated region
        $region17: #{tpu_custom_call.1} parent=15 // pred_check
          %p129 = pneg %p52
        $region18: #{tpu_custom_call.1} parent=15 // pred_check_branch
          %131 = sbr.rel (%p129) target = $region20
        $region19: #{tpu_custom_call.1} parent=15 // pred_region
          %s132 = sand.u32 %s42, 1
          %s133 = scalar_lea.sflag [#allocation3], %s132
          %s134 = sand.u32 %s42, 1
          %s135 = smul.addr %s134, 512
          %s136 = scalar_lea.vmem [#allocation2], %s135
          %s137 = smul.u32 64, %s26
          %s139 = ssub.s32 8192, 8192
          %140 = vsyncadd %s133, %s139
          %s141 = smul.addr %s25, 64
          %s142 = sadd.s32 %s137, %s141
          %s143 = smul.addr %s142, 128
          %s144 = scalar_lea.hbm %s0, %s143
          %s145 = sshll.u32 %s136, 4
          %s146 = int_to_ptr.vmem [resolvable:$true] %s145
          %151 = dma.hbm_to_vmem [thread:$0]  %s144, 8192, %s146, %s133, 128, 128, 8
        $region20: #{tpu_custom_call.1} parent=15 // pred_fallthru
          _
      $region16: #{tpu_custom_call.1} parent=5 // pred_fallthru
        _
      %p152 = scmp.le.s32.totalorder 1, %s18
      %p153 = scmp.lt.s32.totalorder %s18, 3
      %p154 = pnand %p152, %p153
      %p155 = pneg %p154
      // Predicated region
      $region21: #{tpu_custom_call.1} parent=5 // pred_check
        _
      $region22: #{tpu_custom_call.1} parent=5 // pred_check_branch
        %157 = sbr.rel (%p154) target = $region24
      $region23: #{tpu_custom_call.1} parent=5 // pred_region
        %s158 = ssub.s32 %s18, 1
        %s159 = sand.u32 %s45, 1
        %s160 = scalar_lea.sflag [#allocation3], %s159
        %s161 = sand.u32 %s45, 1
        %s162 = smul.addr %s161, 512
        %s163 = scalar_lea.vmem [#allocation2], %s162
        // Predicated region
        $region25: #{tpu_custom_call.1} parent=23 // pred_check
          %p164 = pneg %p58
        $region26: #{tpu_custom_call.1} parent=23 // pred_check_branch
          %166 = sbr.rel (%p164) target = $region28
        $region27: #{tpu_custom_call.1} parent=23 // pred_region
          %167 = dma.done %s160, 8192
        $region28: #{tpu_custom_call.1} parent=23 // pred_fallthru
          _
        %s168 = sand.u32 %s45, 1
        %s169 = scalar_lea.sflag [#allocation3], %s168
        %s170 = sand.u32 %s45, 1
        %s171 = smul.addr %s170, 512
        %s172 = scalar_lea.vmem [#allocation2], %s171
        %p173 = pneg %p58
        %p174 = pneg %p55
        %p175 = pneg %p84
        %p176 = pneg %p81
        %s177 = sand.u32 %s71, 1
        %s178 = scalar_lea.sflag [#allocation4], %s177
        %s179 = sand.u32 %s71, 1
        %s180 = scalar_lea.vmem [#allocation5], %s179
        %p181 = pneg %p110
        %p182 = pneg %p107
        %s183 = sand.u32 %s97, 1
        %s184 = scalar_lea.sflag [#allocation7], %s183
        %s185 = sand.u32 %s97, 1
        %s186 = scalar_lea.vmem [#allocation6], %s185
        %s187 = smul.u32 64, %s28
        %p188 = scmp.eq.s32.totalorder %s28, 0
        // Predicated region
        $region29: #{tpu_custom_call.1} parent=23 // pred_check
          %p189 = pneg %p188
        $region30: #{tpu_custom_call.1} parent=23 // pred_check_branch
          %191 = sbr.rel (%p189) target = $region32
        $region31: #{tpu_custom_call.1} parent=23 // pred_region
          %vm192 = vcmask 8192
          %193 = vst.msk [vmem:[%s180] sm:$0x1] %vm192, 0.0
          %194 = vst.msk [vmem:[%s186] sm:$0x1] %vm192, 0.0
        $region32: #{tpu_custom_call.1} parent=23 // pred_fallthru
          _
        %v195 = vld [vmem:[%s163] sm:$0xff]
        %v196 = vld [vmem:[%s163 + $0x8] sm:$0xff]
        %v197 = vld [vmem:[%s163 + $0x10] sm:$0xff]
        %v198 = vld [vmem:[%s163 + $0x18] sm:$0xff]
        %v199 = vld [vmem:[%s163 + $0x20] sm:$0xff]
        %v200 = vld [vmem:[%s163 + $0x28] sm:$0xff]
        %v201 = vld [vmem:[%s163 + $0x30] sm:$0xff]
        %v202 = vld [vmem:[%s163 + $0x38] sm:$0xff]
        %v203 = vld [vmem:[%s163 + $0x40] sm:$0xff]
        %v204 = vld [vmem:[%s163 + $0x48] sm:$0xff]
        %v205 = vld [vmem:[%s163 + $0x50] sm:$0xff]
        %v206 = vld [vmem:[%s163 + $0x58] sm:$0xff]
        %v207 = vld [vmem:[%s163 + $0x60] sm:$0xff]
        %v208 = vld [vmem:[%s163 + $0x68] sm:$0xff]
        %v209 = vld [vmem:[%s163 + $0x70] sm:$0xff]
        %v210 = vld [vmem:[%s163 + $0x78] sm:$0xff]
        %v211 = vld [vmem:[%s163 + $0x80] sm:$0xff]
        %v212 = vld [vmem:[%s163 + $0x88] sm:$0xff]
        %v213 = vld [vmem:[%s163 + $0x90] sm:$0xff]
        %v214 = vld [vmem:[%s163 + $0x98] sm:$0xff]
        %v215 = vld [vmem:[%s163 + $0xa0] sm:$0xff]
        %v216 = vld [vmem:[%s163 + $0xa8] sm:$0xff]
        %v217 = vld [vmem:[%s163 + $0xb0] sm:$0xff]
        %v218 = vld [vmem:[%s163 + $0xb8] sm:$0xff]
        %v219 = vld [vmem:[%s163 + $0xc0] sm:$0xff]
        %v220 = vld [vmem:[%s163 + $0xc8] sm:$0xff]
        %v221 = vld [vmem:[%s163 + $0xd0] sm:$0xff]
        %v222 = vld [vmem:[%s163 + $0xd8] sm:$0xff]
        %v223 = vld [vmem:[%s163 + $0xe0] sm:$0xff]
        %v224 = vld [vmem:[%s163 + $0xe8] sm:$0xff]
        %v225 = vld [vmem:[%s163 + $0xf0] sm:$0xff]
        %v226 = vld [vmem:[%s163 + $0xf8] sm:$0xff]
        %v227 = vld [vmem:[%s163 + $0x100] sm:$0xff]
        %v228 = vld [vmem:[%s163 + $0x108] sm:$0xff]
        %v229 = vld [vmem:[%s163 + $0x110] sm:$0xff]
        %v230 = vld [vmem:[%s163 + $0x118] sm:$0xff]
        %v231 = vld [vmem:[%s163 + $0x120] sm:$0xff]
        %v232 = vld [vmem:[%s163 + $0x128] sm:$0xff]
        %v233 = vld [vmem:[%s163 + $0x130] sm:$0xff]
        %v234 = vld [vmem:[%s163 + $0x138] sm:$0xff]
        %v235 = vld [vmem:[%s163 + $0x140] sm:$0xff]
        %v236 = vld [vmem:[%s163 + $0x148] sm:$0xff]
        %v237 = vld [vmem:[%s163 + $0x150] sm:$0xff]
        %v238 = vld [vmem:[%s163 + $0x158] sm:$0xff]
        %v239 = vld [vmem:[%s163 + $0x160] sm:$0xff]
        %v240 = vld [vmem:[%s163 + $0x168] sm:$0xff]
        %v241 = vld [vmem:[%s163 + $0x170] sm:$0xff]
        %v242 = vld [vmem:[%s163 + $0x178] sm:$0xff]
        %v243 = vld [vmem:[%s163 + $0x180] sm:$0xff]
        %v244 = vld [vmem:[%s163 + $0x188] sm:$0xff]
        %v245 = vld [vmem:[%s163 + $0x190] sm:$0xff]
        %v246 = vld [vmem:[%s163 + $0x198] sm:$0xff]
        %v247 = vld [vmem:[%s163 + $0x1a0] sm:$0xff]
        %v248 = vld [vmem:[%s163 + $0x1a8] sm:$0xff]
        %v249 = vld [vmem:[%s163 + $0x1b0] sm:$0xff]
        %v250 = vld [vmem:[%s163 + $0x1b8] sm:$0xff]
        %v251 = vld [vmem:[%s163 + $0x1c0] sm:$0xff]
        %v252 = vld [vmem:[%s163 + $0x1c8] sm:$0xff]
        %v253 = vld [vmem:[%s163 + $0x1d0] sm:$0xff]
        %v254 = vld [vmem:[%s163 + $0x1d8] sm:$0xff]
        %v255 = vld [vmem:[%s163 + $0x1e0] sm:$0xff]
        %v256 = vld [vmem:[%s163 + $0x1e8] sm:$0xff]
        %v257 = vld [vmem:[%s163 + $0x1f0] sm:$0xff]
        %v258 = vld [vmem:[%s163 + $0x1f8] sm:$0xff]
        %v259 = vld [vmem:[%s180] sm:$0x1]
        %vm260 = vcmask 15360
        %v261 = vsel %vm260, %v195, 0.0
        %v262 = vsel %vm260, %v196, 0.0
        %v263 = vadd.f32 %v261, %v262
        %v264 = vsel %vm260, %v197, 0.0
        %v265 = vadd.f32 %v263, %v264
        %v266 = vsel %vm260, %v198, 0.0
        %v267 = vadd.f32 %v265, %v266
        %v268 = vsel %vm260, %v199, 0.0
        %v269 = vadd.f32 %v267, %v268
        %v270 = vsel %vm260, %v200, 0.0
        %v271 = vadd.f32 %v269, %v270
        %v272 = vsel %vm260, %v201, 0.0
        %v273 = vadd.f32 %v271, %v272
        %v274 = vsel %vm260, %v202, 0.0
        %v275 = vadd.f32 %v273, %v274
        %v276 = vsel %vm260, %v203, 0.0
        %v277 = vadd.f32 %v275, %v276
        %v278 = vsel %vm260, %v204, 0.0
        %v279 = vadd.f32 %v277, %v278
        %v280 = vsel %vm260, %v205, 0.0
        %v281 = vadd.f32 %v279, %v280
        %v282 = vsel %vm260, %v206, 0.0
        %v283 = vadd.f32 %v281, %v282
        %v284 = vsel %vm260, %v207, 0.0
        %v285 = vadd.f32 %v283, %v284
        %v286 = vsel %vm260, %v208, 0.0
        %v287 = vadd.f32 %v285, %v286
        %v288 = vsel %vm260, %v209, 0.0
        %v289 = vadd.f32 %v287, %v288
        %v290 = vsel %vm260, %v210, 0.0
        %v291 = vadd.f32 %v289, %v290
        %v292 = vsel %vm260, %v211, 0.0
        %v293 = vadd.f32 %v291, %v292
        %v294 = vsel %vm260, %v212, 0.0
        %v295 = vadd.f32 %v293, %v294
        %v296 = vsel %vm260, %v213, 0.0
        %v297 = vadd.f32 %v295, %v296
        %v298 = vsel %vm260, %v214, 0.0
        %v299 = vadd.f32 %v297, %v298
        %v300 = vsel %vm260, %v215, 0.0
        %v301 = vadd.f32 %v299, %v300
        %v302 = vsel %vm260, %v216, 0.0
        %v303 = vadd.f32 %v301, %v302
        %v304 = vsel %vm260, %v217, 0.0
        %v305 = vadd.f32 %v303, %v304
        %v306 = vsel %vm260, %v218, 0.0
        %v307 = vadd.f32 %v305, %v306
        %v308 = vsel %vm260, %v219, 0.0
        %v309 = vadd.f32 %v307, %v308
        %v310 = vsel %vm260, %v220, 0.0
        %v311 = vadd.f32 %v309, %v310
        %v312 = vsel %vm260, %v221, 0.0
        %v313 = vadd.f32 %v311, %v312
        %v314 = vsel %vm260, %v222, 0.0
        %v315 = vadd.f32 %v313, %v314
        %v316 = vsel %vm260, %v223, 0.0
        %v317 = vadd.f32 %v315, %v316
        %v318 = vsel %vm260, %v224, 0.0
        %v319 = vadd.f32 %v317, %v318
        %v320 = vsel %vm260, %v225, 0.0
        %v321 = vadd.f32 %v319, %v320
        %v322 = vsel %vm260, %v226, 0.0
        %v323 = vadd.f32 %v321, %v322
        %v324 = vsel %vm260, %v227, 0.0
        %v325 = vadd.f32 %v323, %v324
        %v326 = vsel %vm260, %v228, 0.0
        %v327 = vadd.f32 %v325, %v326
        %v328 = vsel %vm260, %v229, 0.0
        %v329 = vadd.f32 %v327, %v328
        %v330 = vsel %vm260, %v230, 0.0
        %v331 = vadd.f32 %v329, %v330
        %v332 = vsel %vm260, %v231, 0.0
        %v333 = vadd.f32 %v331, %v332
        %v334 = vsel %vm260, %v232, 0.0
        %v335 = vadd.f32 %v333, %v334
        %v336 = vsel %vm260, %v233, 0.0
        %v337 = vadd.f32 %v335, %v336
        %v338 = vsel %vm260, %v234, 0.0
        %v339 = vadd.f32 %v337, %v338
        %v340 = vsel %vm260, %v235, 0.0
        %v341 = vadd.f32 %v339, %v340
        %v342 = vsel %vm260, %v236, 0.0
        %v343 = vadd.f32 %v341, %v342
        %v344 = vsel %vm260, %v237, 0.0
        %v345 = vadd.f32 %v343, %v344
        %v346 = vsel %vm260, %v238, 0.0
        %v347 = vadd.f32 %v345, %v346
        %v348 = vsel %vm260, %v239, 0.0
        %v349 = vadd.f32 %v347, %v348
        %v350 = vsel %vm260, %v240, 0.0
        %v351 = vadd.f32 %v349, %v350
        %v352 = vsel %vm260, %v241, 0.0
        %v353 = vadd.f32 %v351, %v352
        %v354 = vsel %vm260, %v242, 0.0
        %v355 = vadd.f32 %v353, %v354
        %v356 = vsel %vm260, %v243, 0.0
        %v357 = vadd.f32 %v355, %v356
        %v358 = vsel %vm260, %v244, 0.0
        %v359 = vadd.f32 %v357, %v358
        %v360 = vsel %vm260, %v245, 0.0
        %v361 = vadd.f32 %v359, %v360
        %v362 = vsel %vm260, %v246, 0.0
        %v363 = vadd.f32 %v361, %v362
        %v364 = vsel %vm260, %v247, 0.0
        %v365 = vadd.f32 %v363, %v364
        %v366 = vsel %vm260, %v248, 0.0
        %v367 = vadd.f32 %v365, %v366
        %v368 = vsel %vm260, %v249, 0.0
        %v369 = vadd.f32 %v367, %v368
        %v370 = vsel %vm260, %v250, 0.0
        %v371 = vadd.f32 %v369, %v370
        %v372 = vsel %vm260, %v251, 0.0
        %v373 = vadd.f32 %v371, %v372
        %v374 = vsel %vm260, %v252, 0.0
        %v375 = vadd.f32 %v373, %v374
        %v376 = vsel %vm260, %v253, 0.0
        %v377 = vadd.f32 %v375, %v376
        %v378 = vsel %vm260, %v254, 0.0
        %v379 = vadd.f32 %v377, %v378
        %v380 = vsel %vm260, %v255, 0.0
        %v381 = vadd.f32 %v379, %v380
        %v382 = vsel %vm260, %v256, 0.0
        %v383 = vadd.f32 %v381, %v382
        %v384 = vsel %vm260, %v257, 0.0
        %v385 = vadd.f32 %v383, %v384
        %v386 = vsel %vm260, %v258, 0.0
        %v387 = vadd.f32 %v385, %v386
        %v388 = vrot.slane %v387, 4
        %v389 = vadd.f32 %v387, %v388
        %v390 = vrot.slane %v389, 2
        %v391 = vadd.f32 %v389, %v390
        %v392 = vrot.slane %v391, 1
        %v393 = vadd.f32 %v391, %v392
        %v394 = vadd.f32 %v259, %v393
        %vm395 = vcmask 8192
        %396 = vst.msk [vmem:[%s180] sm:$0x1] %vm395, %v394
        %v397 = vld [vmem:[%s186] sm:$0x1]
        %v398 = vmul.f32 %v195, %v195
        %v399 = vmul.f32 %v196, %v196
        %v400 = vmul.f32 %v197, %v197
        %v401 = vmul.f32 %v198, %v198
        %v402 = vmul.f32 %v199, %v199
        %v403 = vmul.f32 %v200, %v200
        %v404 = vmul.f32 %v201, %v201
        %v405 = vmul.f32 %v202, %v202
        %v406 = vmul.f32 %v203, %v203
        %v407 = vmul.f32 %v204, %v204
        %v408 = vmul.f32 %v205, %v205
        %v409 = vmul.f32 %v206, %v206
        %v410 = vmul.f32 %v207, %v207
        %v411 = vmul.f32 %v208, %v208
        %v412 = vmul.f32 %v209, %v209
        %v413 = vmul.f32 %v210, %v210
        %v414 = vmul.f32 %v211, %v211
        %v415 = vmul.f32 %v212, %v212
        %v416 = vmul.f32 %v213, %v213
        %v417 = vmul.f32 %v214, %v214
        %v418 = vmul.f32 %v215, %v215
        %v419 = vmul.f32 %v216, %v216
        %v420 = vmul.f32 %v217, %v217
        %v421 = vmul.f32 %v218, %v218
        %v422 = vmul.f32 %v219, %v219
        %v423 = vmul.f32 %v220, %v220
        %v424 = vmul.f32 %v221, %v221
        %v425 = vmul.f32 %v222, %v222
        %v426 = vmul.f32 %v223, %v223
        %v427 = vmul.f32 %v224, %v224
        %v428 = vmul.f32 %v225, %v225
        %v429 = vmul.f32 %v226, %v226
        %v430 = vmul.f32 %v227, %v227
        %v431 = vmul.f32 %v228, %v228
        %v432 = vmul.f32 %v229, %v229
        %v433 = vmul.f32 %v230, %v230
        %v434 = vmul.f32 %v231, %v231
        %v435 = vmul.f32 %v232, %v232
        %v436 = vmul.f32 %v233, %v233
        %v437 = vmul.f32 %v234, %v234
        %v438 = vmul.f32 %v235, %v235
        %v439 = vmul.f32 %v236, %v236
        %v440 = vmul.f32 %v237, %v237
        %v441 = vmul.f32 %v238, %v238
        %v442 = vmul.f32 %v239, %v239
        %v443 = vmul.f32 %v240, %v240
        %v444 = vmul.f32 %v241, %v241
        %v445 = vmul.f32 %v242, %v242
        %v446 = vmul.f32 %v243, %v243
        %v447 = vmul.f32 %v244, %v244
        %v448 = vmul.f32 %v245, %v245
        %v449 = vmul.f32 %v246, %v246
        %v450 = vmul.f32 %v247, %v247
        %v451 = vmul.f32 %v248, %v248
        %v452 = vmul.f32 %v249, %v249
        %v453 = vmul.f32 %v250, %v250
        %v454 = vmul.f32 %v251, %v251
        %v455 = vmul.f32 %v252, %v252
        %v456 = vmul.f32 %v253, %v253
        %v457 = vmul.f32 %v254, %v254
        %v458 = vmul.f32 %v255, %v255
        %v459 = vmul.f32 %v256, %v256
        %v460 = vmul.f32 %v257, %v257
        %v461 = vmul.f32 %v258, %v258
        %v462 = vsel %vm260, %v398, 0.0
        %v463 = vsel %vm260, %v399, 0.0
        %v464 = vadd.f32 %v462, %v463
        %v465 = vsel %vm260, %v400, 0.0
        %v466 = vadd.f32 %v464, %v465
        %v467 = vsel %vm260, %v401, 0.0
        %v468 = vadd.f32 %v466, %v467
        %v469 = vsel %vm260, %v402, 0.0
        %v470 = vadd.f32 %v468, %v469
        %v471 = vsel %vm260, %v403, 0.0
        %v472 = vadd.f32 %v470, %v471
        %v473 = vsel %vm260, %v404, 0.0
        %v474 = vadd.f32 %v472, %v473
        %v475 = vsel %vm260, %v405, 0.0
        %v476 = vadd.f32 %v474, %v475
        %v477 = vsel %vm260, %v406, 0.0
        %v478 = vadd.f32 %v476, %v477
        %v479 = vsel %vm260, %v407, 0.0
        %v480 = vadd.f32 %v478, %v479
        %v481 = vsel %vm260, %v408, 0.0
        %v482 = vadd.f32 %v480, %v481
        %v483 = vsel %vm260, %v409, 0.0
        %v484 = vadd.f32 %v482, %v483
        %v485 = vsel %vm260, %v410, 0.0
        %v486 = vadd.f32 %v484, %v485
        %v487 = vsel %vm260, %v411, 0.0
        %v488 = vadd.f32 %v486, %v487
        %v489 = vsel %vm260, %v412, 0.0
        %v490 = vadd.f32 %v488, %v489
        %v491 = vsel %vm260, %v413, 0.0
        %v492 = vadd.f32 %v490, %v491
        %v493 = vsel %vm260, %v414, 0.0
        %v494 = vadd.f32 %v492, %v493
        %v495 = vsel %vm260, %v415, 0.0
        %v496 = vadd.f32 %v494, %v495
        %v497 = vsel %vm260, %v416, 0.0
        %v498 = vadd.f32 %v496, %v497
        %v499 = vsel %vm260, %v417, 0.0
        %v500 = vadd.f32 %v498, %v499
        %v501 = vsel %vm260, %v418, 0.0
        %v502 = vadd.f32 %v500, %v501
        %v503 = vsel %vm260, %v419, 0.0
        %v504 = vadd.f32 %v502, %v503
        %v505 = vsel %vm260, %v420, 0.0
        %v506 = vadd.f32 %v504, %v505
        %v507 = vsel %vm260, %v421, 0.0
        %v508 = vadd.f32 %v506, %v507
        %v509 = vsel %vm260, %v422, 0.0
        %v510 = vadd.f32 %v508, %v509
        %v511 = vsel %vm260, %v423, 0.0
        %v512 = vadd.f32 %v510, %v511
        %v513 = vsel %vm260, %v424, 0.0
        %v514 = vadd.f32 %v512, %v513
        %v515 = vsel %vm260, %v425, 0.0
        %v516 = vadd.f32 %v514, %v515
        %v517 = vsel %vm260, %v426, 0.0
        %v518 = vadd.f32 %v516, %v517
        %v519 = vsel %vm260, %v427, 0.0
        %v520 = vadd.f32 %v518, %v519
        %v521 = vsel %vm260, %v428, 0.0
        %v522 = vadd.f32 %v520, %v521
        %v523 = vsel %vm260, %v429, 0.0
        %v524 = vadd.f32 %v522, %v523
        %v525 = vsel %vm260, %v430, 0.0
        %v526 = vadd.f32 %v524, %v525
        %v527 = vsel %vm260, %v431, 0.0
        %v528 = vadd.f32 %v526, %v527
        %v529 = vsel %vm260, %v432, 0.0
        %v530 = vadd.f32 %v528, %v529
        %v531 = vsel %vm260, %v433, 0.0
        %v532 = vadd.f32 %v530, %v531
        %v533 = vsel %vm260, %v434, 0.0
        %v534 = vadd.f32 %v532, %v533
        %v535 = vsel %vm260, %v435, 0.0
        %v536 = vadd.f32 %v534, %v535
        %v537 = vsel %vm260, %v436, 0.0
        %v538 = vadd.f32 %v536, %v537
        %v539 = vsel %vm260, %v437, 0.0
        %v540 = vadd.f32 %v538, %v539
        %v541 = vsel %vm260, %v438, 0.0
        %v542 = vadd.f32 %v540, %v541
        %v543 = vsel %vm260, %v439, 0.0
        %v544 = vadd.f32 %v542, %v543
        %v545 = vsel %vm260, %v440, 0.0
        %v546 = vadd.f32 %v544, %v545
        %v547 = vsel %vm260, %v441, 0.0
        %v548 = vadd.f32 %v546, %v547
        %v549 = vsel %vm260, %v442, 0.0
        %v550 = vadd.f32 %v548, %v549
        %v551 = vsel %vm260, %v443, 0.0
        %v552 = vadd.f32 %v550, %v551
        %v553 = vsel %vm260, %v444, 0.0
        %v554 = vadd.f32 %v552, %v553
        %v555 = vsel %vm260, %v445, 0.0
        %v556 = vadd.f32 %v554, %v555
        %v557 = vsel %vm260, %v446, 0.0
        %v558 = vadd.f32 %v556, %v557
        %v559 = vsel %vm260, %v447, 0.0
        %v560 = vadd.f32 %v558, %v559
        %v561 = vsel %vm260, %v448, 0.0
        %v562 = vadd.f32 %v560, %v561
        %v563 = vsel %vm260, %v449, 0.0
        %v564 = vadd.f32 %v562, %v563
        %v565 = vsel %vm260, %v450, 0.0
        %v566 = vadd.f32 %v564, %v565
        %v567 = vsel %vm260, %v451, 0.0
        %v568 = vadd.f32 %v566, %v567
        %v569 = vsel %vm260, %v452, 0.0
        %v570 = vadd.f32 %v568, %v569
        %v571 = vsel %vm260, %v453, 0.0
        %v572 = vadd.f32 %v570, %v571
        %v573 = vsel %vm260, %v454, 0.0
        %v574 = vadd.f32 %v572, %v573
        %v575 = vsel %vm260, %v455, 0.0
        %v576 = vadd.f32 %v574, %v575
        %v577 = vsel %vm260, %v456, 0.0
        %v578 = vadd.f32 %v576, %v577
        %v579 = vsel %vm260, %v457, 0.0
        %v580 = vadd.f32 %v578, %v579
        %v581 = vsel %vm260, %v458, 0.0
        %v582 = vadd.f32 %v580, %v581
        %v583 = vsel %vm260, %v459, 0.0
        %v584 = vadd.f32 %v582, %v583
        %v585 = vsel %vm260, %v460, 0.0
        %v586 = vadd.f32 %v584, %v585
        %v587 = vsel %vm260, %v461, 0.0
        %v588 = vadd.f32 %v586, %v587
        %v589 = vrot.slane %v588, 4
        %v590 = vadd.f32 %v588, %v589
        %v591 = vrot.slane %v590, 2
        %v592 = vadd.f32 %v590, %v591
        %v593 = vrot.slane %v592, 1
        %v594 = vadd.f32 %v592, %v593
        %v595 = vadd.f32 %v397, %v594
        %596 = vst.msk [vmem:[%s186] sm:$0x1] %vm395, %v595
        %s597 = sand.u32 %s71, 1
        %s598 = scalar_lea.sflag [#allocation4], %s597
        %s599 = sand.u32 %s71, 1
        %s600 = scalar_lea.vmem [#allocation5], %s599
        %s601 = sand.u32 %s97, 1
        %s602 = scalar_lea.sflag [#allocation7], %s601
        %s603 = sand.u32 %s97, 1
        %s604 = scalar_lea.vmem [#allocation6], %s603
        // Predicated region
        $region33: #{tpu_custom_call.1} parent=23 // pred_check
          %p605 = pneg %p81
        $region34: #{tpu_custom_call.1} parent=23 // pred_check_branch
          %607 = sbr.rel (%p605) target = $region36
        $region35: #{tpu_custom_call.1} parent=23 // pred_region
          %s609 = ssub.s32 16, 16
          %610 = vsyncadd %s598, %s609
          %s611 = smul.addr %s27, 16
          %s612 = scalar_lea.hbm %s1, %s611
          %s614 = sshll.u32 %s600, 4
          %s615 = int_to_ptr.vmem [resolvable:$true] %s614
          %617 = dma.vmem_to_hbm [thread:$0]  %s615, 16, %s612, %s598
        $region36: #{tpu_custom_call.1} parent=23 // pred_fallthru
          _
        // Predicated region
        $region37: #{tpu_custom_call.1} parent=23 // pred_check
          %p618 = pneg %p107
        $region38: #{tpu_custom_call.1} parent=23 // pred_check_branch
          %620 = sbr.rel (%p618) target = $region40
        $region39: #{tpu_custom_call.1} parent=23 // pred_region
          %s622 = ssub.s32 16, 16
          %623 = vsyncadd %s602, %s622
          %s624 = smul.addr %s27, 16
          %s625 = scalar_lea.hbm %s2, %s624
          %s627 = sshll.u32 %s604, 4
          %s628 = int_to_ptr.vmem [resolvable:$true] %s627
          %630 = dma.vmem_to_hbm [thread:$0]  %s628, 16, %s625, %s602
        $region40: #{tpu_custom_call.1} parent=23 // pred_fallthru
          _
      $region24: #{tpu_custom_call.1} parent=5 // pred_fallthru
        _
      %p631 = scmp.le.s32.totalorder 2, %s18
      // Predicated region
      $region41: #{tpu_custom_call.1} parent=5 // pred_check
        %p632 = pneg %p631
      $region42: #{tpu_custom_call.1} parent=5 // pred_check_branch
        %634 = sbr.rel (%p632) target = $region44
      $region43: #{tpu_custom_call.1} parent=5 // pred_region
        %s635 = ssub.s32 %s18, 2
        // Predicated region
        $region45: #{tpu_custom_call.1} parent=43 // pred_check
          %p636 = pneg %p87
        $region46: #{tpu_custom_call.1} parent=43 // pred_check_branch
          %638 = sbr.rel (%p636) target = $region48
        $region47: #{tpu_custom_call.1} parent=43 // pred_region
          %s639 = sand.u32 %s72, 1
          %s640 = scalar_lea.sflag [#allocation4], %s639
          %s641 = sand.u32 %s72, 1
          %s642 = scalar_lea.vmem [#allocation5], %s641
          %643 = dma.done %s640, 16
        $region48: #{tpu_custom_call.1} parent=43 // pred_fallthru
          _
        // Predicated region
        $region49: #{tpu_custom_call.1} parent=43 // pred_check
          %p644 = pneg %p113
        $region50: #{tpu_custom_call.1} parent=43 // pred_check_branch
          %646 = sbr.rel (%p644) target = $region52
        $region51: #{tpu_custom_call.1} parent=43 // pred_region
          %s647 = sand.u32 %s98, 1
          %s648 = scalar_lea.sflag [#allocation7], %s647
          %s649 = sand.u32 %s98, 1
          %s650 = scalar_lea.vmem [#allocation6], %s649
          %651 = dma.done %s648, 16
        $region52: #{tpu_custom_call.1} parent=43 // pred_fallthru
          _
      $region44: #{tpu_custom_call.1} parent=5 // pred_fallthru
        _
    $region6: #{tpu_custom_call.1} parent=1 // loop_footer
      %s22 = sadd.s32 1, %s18
    $region7: #{tpu_custom_call.1} parent=1 // loop_footer_branch
      %17 = sbr.rel target = $region3
    $region8: #{tpu_custom_call.1} parent=1 // loop_exit
      _
    %652 = vsyncpa [#allocation3], 1
    %s653 = scalar_lea.sflag [#allocation3], 1
    %654 = vsyncpa %s653, 1
    %655 = vsyncpa [#allocation4], 1
    %s656 = scalar_lea.sflag [#allocation4], 1
    %657 = vsyncpa %s656, 1
    %658 = vsyncpa [#allocation7], 1
    %s659 = scalar_lea.sflag [#allocation7], 1
    %660 = vsyncpa %s659, 1

</llo_original>
